<compile_context>
chip_gen: v5e
topology: v5e:2x2
jax: 0.10.0
libtpu: 0.0.40
codegen_flags: <defaults>
</compile_context>

<pallas_src>
import jax
import jax.numpy as jnp
from jax.experimental import pallas as pl
from jax.experimental.pallas import tpu as pltpu


def _vmem_capacity_bytes():
    """Physical VMEM per TensorCore; conservative fallback if unqueryable."""
    try:
        return int(pltpu.get_tpu_info().vmem_capacity_bytes)
    except Exception:
        return 64 << 20  # v7x-sized fallback: safe on every generation


def _choose_tile(dim, target, align):
    if dim <= target:
        return dim                              # full-dim block: always legal
    return max(align, (target // align) * align)


def _round_up(x, m):
    return ((x + m - 1) // m) * m


def metric_mutual_loss(dist1, dist2, pids=None, *, row_tile=None, col_tile=None):
    """MSE(dist1, dist2). `pids` is accepted for signature parity but unused."""
    assert dist1.shape == dist2.shape and dist1.ndim == 2
    B, N = dist1.shape
    numel = B * N
    itemsize = jnp.dtype(dist1.dtype).itemsize

    vmem_cap = _vmem_capacity_bytes()
    big_vmem = vmem_cap >= (100 << 20)          # v5e/v6e (128 MiB) vs v7x (64 MiB)
    budget = (vmem_cap * 3) // 4                # ~96 MiB / ~48 MiB tile budget

    # Sublane alignment for the input dtype (8 f32 / 16 bf16 / 32 int8-fp8).
    row_align = max(8, 32 // itemsize)

    if row_tile is None:
        row_tile = 512 if big_vmem else 256
    if col_tile is None:
        col_tile = 4096

    tr = _choose_tile(B, row_tile, row_align)
    tc = _choose_tile(N, col_tile, 128)

    # v7x has 2 TensorCores: make sure the "parallel" (row-block) axis has >= 2
    # blocks for the common square BxB case so both cores get work.
    if (not big_vmem) and B >= 2 * row_align and (B + tr - 1) // tr == 1:
        tr = _round_up((B + 1) // 2, row_align)   # < B here, so grid[0] >= 2

    def _need_bytes(tr_, tc_):
        acc_rows = 8 if tr_ % 8 == 0 else tr_
        return (4 * tr_ * tc_ * itemsize        # 2 inputs x double buffer
                + acc_rows * tc_ * 4            # f32 accumulator
                + 2 * 8 * 128 * 4               # partial-output buffers
                + (2 << 20))                    # slack

    # Graceful shrink (instead of a compile failure) if tiles exceed the budget.
    while _need_bytes(tr, tc) > budget:
        if tc > 128:
            tc = max(128, ((tc // 2) // 128) * 128)
        elif tr > 8:
            tr = max(8, ((tr // 2) // 8) * 8)
        else:
            break

    grid = ((B + tr - 1) // tr, (N + tc - 1) // tc)
    need_row_mask = (B % tr) != 0
    need_col_mask = (N % tc) != 0
    AR = 8 if tr % 8 == 0 else tr               # accumulator rows (row-folded)
    LW = 128 if tc % 128 == 0 else tc           # lane width of per-block partial

    def kernel(d1_ref, d2_ref, out_ref, acc_ref):
        i = pl.program_id(0)
        j = pl.program_id(1)

        @pl.when(j == 0)
        def _():
            acc_ref[...] = jnp.zeros_like(acc_ref)

        d1 = d1_ref[...].astype(jnp.float32)
        d2 = d2_ref[...].astype(jnp.float32)
        diff = d1 - d2
        dd = diff * diff

        # Mask ragged tails in-kernel (replaces the old jnp.pad HBM round-trip).
        if need_row_mask or need_col_mask:
            valid = None
            if need_row_mask:
                rows = jax.lax.broadcasted_iota(jnp.int32, (tr, tc), 0) + i * tr
                valid = rows < B
            if need_col_mask:
                cols = jax.lax.broadcasted_iota(jnp.int32, (tr, tc), 1) + j * tc
                cmask = cols < N
                valid = cmask if valid is None else (valid & cmask)
            dd = jnp.where(valid, dd, 0.0)

        # Fold rows into the (AR, tc) accumulator: pure VPU vreg adds, no XLU.
        if tr == AR:
            acc_ref[...] += dd
        else:
            folded = dd[0:AR, :]
            for r in range(1, tr // AR):
                folded = folded + dd[r * AR:(r + 1) * AR, :]
            acc_ref[...] += folded

        @pl.when(j == pl.num_programs(1) - 1)
        def _():
            acc = acc_ref[...]
            if LW == tc:
                out_ref[0, :, :] = acc
            else:
                # Fold lane groups down to one lane-dense (AR, 128) slab:
                # unmasked store, no XLU tree reduce in the epilogue.
                res = acc[:, 0:128]
                for c in range(1, tc // 128):
                    res = res + acc[:, c * 128:(c + 1) * 128]
                out_ref[0, :, :] = res

    in_spec = pl.BlockSpec((tr, tc), lambda i, j: (i, j))
    out_spec = pl.BlockSpec((1, AR, LW), lambda i, j: (i, 0, 0))

    vmem_limit = int(min(budget, max(32 << 20, _need_bytes(tr, tc) + (8 << 20))))

    partials = pl.pallas_call(
        kernel,
        out_shape=jax.ShapeDtypeStruct((grid[0], AR, LW), jnp.float32),
        grid_spec=pltpu.PrefetchScalarGridSpec(
            num_scalar_prefetch=0,
            grid=grid,
            in_specs=[in_spec, in_spec],
            out_specs=out_spec,
            scratch_shapes=[pltpu.VMEM((AR, tc), jnp.float32)],
        ),
        compiler_params=pltpu.CompilerParams(
            dimension_semantics=("parallel", "arbitrary"),
            vmem_limit_bytes=vmem_limit,
        ),
        cost_estimate=pl.CostEstimate(
            flops=3 * numel,
            transcendentals=0,
            bytes_accessed=2 * numel * itemsize + grid[0] * AR * LW * 4,
        ),
    )(dist1, dist2)

    # Tiny final cross-lane reduce + mean in plain JAX (true element count).
    return jnp.sum(partials) / jnp.float32(numel)


if __name__ == "__main__":
    key = jax.random.PRNGKey(0)
    k1, k2, k3, k4, k5, k6 = jax.random.split(key, 6)

    # Case 1: small square pairwise-distance matrices (the module's typical use).
    B = 16
    dist1 = jax.random.uniform(k1, (B, B), dtype=jnp.float32)
    dist2 = jax.random.uniform(k2, (B, B), dtype=jnp.float32)
    pids = jnp.arange(B, dtype=jnp.int32)       # unused by the loss (as in torch)
    loss = jax.block_until_ready(metric_mutual_loss(dist1, dist2, pids))
    ref = jnp.mean((dist1 - dist2) ** 2)
    assert jnp.allclose(loss, ref, rtol=1e-5, atol=1e-6), (loss, ref)

    # Case 2: ragged columns with small tile overrides -> in-kernel column
    # masking, multi-block 2D grid, lane-dense partial path.
    d1b = jax.random.uniform(k3, (96, 200), dtype=jnp.float32)
    d2b = jax.random.uniform(k4, (96, 200), dtype=jnp.float32)
    loss_b = jax.block_until_ready(
        metric_mutual_loss(d1b, d2b, None, row_tile=32, col_tile=128))
    ref_b = jnp.mean((d1b - d2b) ** 2)
    assert jnp.allclose(loss_b, ref_b, rtol=1e-5, atol=1e-6), (loss_b, ref_b)

    # Case 3: ragged rows AND columns with >1 lane group per block -> row mask,
    # row fold into the (8, tc) accumulator, lane-group fold to (8, 128).
    d1c = jax.random.uniform(k5, (70, 520), dtype=jnp.float32)
    d2c = jax.random.uniform(k6, (70, 520), dtype=jnp.float32)
    loss_c = jax.block_until_ready(
        metric_mutual_loss(d1c, d2c, None, row_tile=32, col_tile=256))
    ref_c = jnp.mean((d1c - d2c) ** 2)
    assert jnp.allclose(loss_c, ref_c, rtol=1e-5, atol=1e-6), (loss_c, ref_c)

    print("KERNEL_OK")
</pallas_src>

<mosaic_0001>
module attributes {stable_mosaic.version = 11 : i64} {
  func.func @kernel(%arg0: i32, %arg1: i32, %arg2: memref<8x16xf32, #tpu.memory_space<vmem>>, %arg3: memref<8x16xf32, #tpu.memory_space<vmem>>, %arg4: memref<1x8x16xf32, #tpu.memory_space<vmem>>, %arg5: memref<8x16xf32, #tpu.memory_space<vmem>>) attributes {dimension_semantics = [#tpu.dimension_semantics<parallel>, #tpu.dimension_semantics<arbitrary>], iteration_bounds = array<i64: 2, 1>, scalar_prefetch = 0 : i64, scratch_operands = 1 : i64, tpu.core_type = #tpu.core_type<tc>, window_params = [{transform_indices = @transform_0, window_bounds = array<i64: 8, 16>}, {transform_indices = @transform_1, window_bounds = array<i64: 8, 16>}, {transform_indices = @transform_2, window_bounds = array<i64: 1, 8, 16>}]} {
    %c0_i32 = arith.constant 0 : i32
    %0 = arith.cmpi eq, %arg1, %c0_i32 : i32
    %1 = arith.extui %0 : i1 to i32
    %c0_i32_0 = arith.constant 0 : i32
    %2 = arith.cmpi ne, %1, %c0_i32_0 : i32
    scf.if %2 {
      %cst = arith.constant 0.000000e+00 : f32
      %13 = vector.broadcast %cst : f32 to vector<8x16xf32>
      %c0_10 = arith.constant 0 : index
      %c0_11 = arith.constant 0 : index
      %14 = vector.load %arg5[%c0_10, %c0_11] : memref<8x16xf32, #tpu.memory_space<vmem>>, vector<8x16xf32>
      tpu.vector_store %arg5[%c0_10, %c0_11], %13 {strides = array<i32>} : memref<8x16xf32, #tpu.memory_space<vmem>>, vector<8x16xf32>,
    } else {
    }
    %c0 = arith.constant 0 : index
    %c0_1 = arith.constant 0 : index
    %3 = vector.load %arg2[%c0, %c0_1] : memref<8x16xf32, #tpu.memory_space<vmem>>, vector<8x16xf32>
    %c0_2 = arith.constant 0 : index
    %c0_3 = arith.constant 0 : index
    %4 = vector.load %arg3[%c0_2, %c0_3] : memref<8x16xf32, #tpu.memory_space<vmem>>, vector<8x16xf32>
    %5 = arith.subf %3, %4 : vector<8x16xf32>
    %6 = arith.mulf %5, %5 : vector<8x16xf32>
    %c0_4 = arith.constant 0 : index
    %c0_5 = arith.constant 0 : index
    %7 = vector.load %arg5[%c0_4, %c0_5] : memref<8x16xf32, #tpu.memory_space<vmem>>, vector<8x16xf32>
    %8 = arith.addf %7, %6 : vector<8x16xf32>
    %c0_6 = arith.constant 0 : index
    %c0_7 = arith.constant 0 : index
    %9 = vector.load %arg5[%c0_6, %c0_7] : memref<8x16xf32, #tpu.memory_space<vmem>>, vector<8x16xf32>
    tpu.vector_store %arg5[%c0_6, %c0_7], %8 {strides = array<i32>} : memref<8x16xf32, #tpu.memory_space<vmem>>, vector<8x16xf32>,
    %c0_i32_8 = arith.constant 0 : i32
    %10 = arith.cmpi eq, %arg1, %c0_i32_8 : i32
    %11 = arith.extui %10 : i1 to i32
    %c0_i32_9 = arith.constant 0 : i32
    %12 = arith.cmpi ne, %11, %c0_i32_9 : i32
    scf.if %12 {
      %c0_10 = arith.constant 0 : index
      %c0_11 = arith.constant 0 : index
      %13 = vector.load %arg5[%c0_10, %c0_11] : memref<8x16xf32, #tpu.memory_space<vmem>>, vector<8x16xf32>
      %c0_12 = arith.constant 0 : index
      %c0_13 = arith.constant 0 : index
      %c0_14 = arith.constant 0 : index
      %14 = vector.load %arg4[%c0_12, %c0_13, %c0_14] : memref<1x8x16xf32, #tpu.memory_space<vmem>>, vector<1x8x16xf32>
      %15 = vector.shape_cast %14 : vector<1x8x16xf32> to vector<8x16xf32>
      %16 = vector.shape_cast %13 : vector<8x16xf32> to vector<1x8x16xf32>
      tpu.vector_store %arg4[%c0_12, %c0_13, %c0_14], %16 {strides = array<i32>} : memref<1x8x16xf32, #tpu.memory_space<vmem>>, vector<1x8x16xf32>,
    } else {
    }
    return
  }
  func.func @transform_0(%arg0: i32, %arg1: i32) -> (i32, i32) {
    %c0_i32 = arith.constant 0 : i32
    return %arg0, %arg1 : i32, i32
  }
  func.func @transform_1(%arg0: i32, %arg1: i32) -> (i32, i32) {
    %c0_i32 = arith.constant 0 : i32
    return %arg0, %arg1 : i32, i32
  }
  func.func @transform_2(%arg0: i32, %arg1: i32) -> (i32, i32, i32) {
    %c0_i32 = arith.constant 0 : i32
    %c0_i32_0 = arith.constant 0 : i32
    %c0_i32_1 = arith.constant 0 : i32
    return %arg0, %c0_i32, %c0_i32_0 : i32, i32, i32
  }
}

</mosaic_0001>

<llo_original>
// kernel: tpu_custom_call.1
$region0: #{tpu_custom_call.1}
  #allocation0 [shape = 'u32[]', space=smem, size = 0x4, offset = 0x4, fixed_abs, tag = 'smem constant byte address 0x4 - core index']
  #allocation1 [shape = 'u32[72,128]{1,0:T(1,128)}', space=vmem, size = 0x9000, scoped, tag = 'internal scratch']
  #allocation2 [shape = 'f32[8,16]{1,0:T(8,128)}', space=vmem, size = 0x1000, scoped, tag = 'scratch operand']
  %s0 = inlined_call_operand.hbm [shape: f32[16,16], index: 0, kind: input, shape index: {}]
  %s1 = inlined_call_operand.hbm [shape: f32[16,16], index: 1, kind: input, shape index: {}]
  %s2 = inlined_call_operand.hbm [shape: f32[2,8,16], index: 2, kind: output, shape index: {}]
  %s3 = sld [smem:[#allocation0]]
  $region57: #{tpu_custom_call.1} parent=0
    _
  %s5 = ssub.s32 1, %s3
  %s6 = scalar_select 0, %s5, %s3
  $region1: #{tpu_custom_call.1} parent=0
    #allocation3 [shape = 'u8[8192]{0}', space=vmem, size = 0x2000, scoped, tag = 'input window, operand 0']
    #allocation4 [shape = 's32[2]{0}', space=sflag, size = 0x8, scoped, tag = 'scoped memory for tpu_custom_call.1']
    #allocation5 [shape = 's32[2]{0}', space=sflag, size = 0x8, scoped, tag = 'scoped memory for tpu_custom_call.1']
    #allocation6 [shape = 'u8[8192]{0}', space=vmem, size = 0x2000, scoped, tag = 'input window, operand 1']
    #allocation7 [shape = 's32[2]{0}', space=sflag, size = 0x8, scoped, tag = 'scoped memory for tpu_custom_call.1']
    #allocation8 [shape = 'u8[8192]{0}', space=vmem, size = 0x2000, scoped, tag = 'output window, operand 0']
    %7 = vsyncpa [#allocation4], 0
    %s8 = scalar_lea.sflag [#allocation4], 1
    %9 = vsyncpa %s8, 0
    %10 = vsyncpa [#allocation7], 0
    %s11 = scalar_lea.sflag [#allocation7], 1
    %12 = vsyncpa %s11, 0
    %13 = vsyncpa [#allocation5], 0
    %s14 = scalar_lea.sflag [#allocation5], 1
    %15 = vsyncpa %s14, 0
    loop: start=0, step=1, limit=4
    $region2: #{tpu_custom_call.1} parent=1 // loop_pre_header
      _
    $region3: #{tpu_custom_call.1} parent=1 // loop_header
      %s17 = sphi 0, %s21
      %p18 = scmp.ge.s32.totalorder %s17, 4
      %s24 = sphi 0, %s36
      %s25 = sphi 0, %s32
      %s26 = sphi 0, %s24
      %s27 = sphi 0, %s25
      %s28 = sphi 0, %s26
      %s29 = sphi 0, %s27
      %s41 = sphi 0, %s43
      %s44 = sphi 0, %s41
      %s45 = sphi 0, %s44
      %s61 = sphi 0, %s45
      %s69 = sphi 0, %s71
      %s72 = sphi 0, %s69
      %s73 = sphi 0, %s72
      %s89 = sphi 0, %s73
      %s95 = sphi 0, %s97
      %s98 = sphi 0, %s95
      %s99 = sphi 0, %s98
      %s115 = sphi 0, %s99
    $region4: #{tpu_custom_call.1} parent=1 // loop_header_branch
      %20 = sbr.rel (%p18) target = $region8
    $region5: #{tpu_custom_call.1} parent=1 // loop_body
      %s22 = ssub.s32 %s17, 1
      %s23 = ssub.s32 %s17, 2
      %s30 = sadd.s32 1, %s25
      %p31 = scmp.ge.s32.totalorder %s30, 1
      %s32 = scalar_select %p31, 0, %s30
      %s33 = sadd.s32 1, %s24
      %s34 = scalar_select %p31, %s33, %s24
      %p35 = scmp.ge.s32.totalorder %s34, 2
      %s36 = scalar_select %p35, 0, %s34
      %s37 = ssub.s32 %s24, %s36
      %s38 = ssub.s32 %s25, %s32
      %s39 = sor.u32 %s37, %s38
      %p40 = scmp.eq.s32.totalorder %s39, 0
      %s42 = sadd.s32 %s41, 1
      %s43 = scalar_select %p40, %s41, %s42
      %p46 = pneg %p40
      %p47 = scmp.eq.s32.totalorder %s17, 1
      %p48 = por %p46, %p47
      %p49 = scmp.ne.s32.totalorder %s41, %s44
      %p50 = scmp.eq.s32.totalorder %s17, 0
      %p51 = por %p49, %p50
      %p52 = scmp.ne.s32.totalorder %s41, %s44
      %p53 = scmp.eq.s32.totalorder %s22, 1
      %p54 = por %p52, %p53
      %p55 = scmp.ne.s32.totalorder %s44, %s45
      %p56 = scmp.eq.s32.totalorder %s22, 0
      %p57 = por %p55, %p56
      %p58 = scmp.ne.s32.totalorder %s44, %s45
      %p59 = scmp.eq.s32.totalorder %s23, 1
      %p60 = por %p58, %p59
      %p62 = scmp.ne.s32.totalorder %s45, %s61
      %p63 = scmp.eq.s32.totalorder %s23, 0
      %p64 = por %p62, %p63
      %s65 = ssub.s32 %s24, %s36
      %s66 = ssub.s32 %s25, %s32
      %s67 = sor.u32 %s65, %s66
      %p68 = scmp.eq.s32.totalorder %s67, 0
      %s70 = sadd.s32 %s69, 1
      %s71 = scalar_select %p68, %s69, %s70
      %p74 = pneg %p68
      %p75 = scmp.eq.s32.totalorder %s17, 1
      %p76 = por %p74, %p75
      %p77 = scmp.ne.s32.totalorder %s69, %s72
      %p78 = scmp.eq.s32.totalorder %s17, 0
      %p79 = por %p77, %p78
      %p80 = scmp.ne.s32.totalorder %s69, %s72
      %p81 = scmp.eq.s32.totalorder %s22, 1
      %p82 = por %p80, %p81
      %p83 = scmp.ne.s32.totalorder %s72, %s73
      %p84 = scmp.eq.s32.totalorder %s22, 0
      %p85 = por %p83, %p84
      %p86 = scmp.ne.s32.totalorder %s72, %s73
      %p87 = scmp.eq.s32.totalorder %s23, 1
      %p88 = por %p86, %p87
      %p90 = scmp.ne.s32.totalorder %s73, %s89
      %p91 = scmp.eq.s32.totalorder %s23, 0
      %p92 = por %p90, %p91
      %s93 = ssub.s32 %s24, %s36
      %p94 = scmp.eq.s32.totalorder %s93, 0
      %s96 = sadd.s32 %s95, 1
      %s97 = scalar_select %p94, %s95, %s96
      %p100 = pneg %p94
      %p101 = scmp.eq.s32.totalorder %s17, 1
      %p102 = por %p100, %p101
      %p103 = scmp.ne.s32.totalorder %s95, %s98
      %p104 = scmp.eq.s32.totalorder %s17, 0
      %p105 = por %p103, %p104
      %p106 = scmp.ne.s32.totalorder %s95, %s98
      %p107 = scmp.eq.s32.totalorder %s22, 1
      %p108 = por %p106, %p107
      %p109 = scmp.ne.s32.totalorder %s98, %s99
      %p110 = scmp.eq.s32.totalorder %s22, 0
      %p111 = por %p109, %p110
      %p112 = scmp.ne.s32.totalorder %s98, %s99
      %p113 = scmp.eq.s32.totalorder %s23, 1
      %p114 = por %p112, %p113
      %p116 = scmp.ne.s32.totalorder %s99, %s115
      %p117 = scmp.eq.s32.totalorder %s23, 0
      %p118 = por %p116, %p117
      %p119 = scmp.le.s32.totalorder 1, %s17
      %p120 = scmp.lt.s32.totalorder %s17, 3
      %p121 = pnand %p119, %p120
      %p122 = pneg %p121
      // Predicated region
      $region9: #{tpu_custom_call.1} parent=5 // pred_check
        _
      $region10: #{tpu_custom_call.1} parent=5 // pred_check_branch
        %124 = sbr.rel (%p121) target = $region12
      $region11: #{tpu_custom_call.1} parent=5 // pred_region
        %s125 = ssub.s32 %s17, 1
      $region12: #{tpu_custom_call.1} parent=5 // pred_fallthru
        _
      %p126 = scmp.lt.s32.totalorder %s17, 2
      // Predicated region
      $region13: #{tpu_custom_call.1} parent=5 // pred_check
        %p127 = pneg %p126
      $region14: #{tpu_custom_call.1} parent=5 // pred_check_branch
        %129 = sbr.rel (%p127) target = $region16
      $region15: #{tpu_custom_call.1} parent=5 // pred_region
        // Predicated region
        $region17: #{tpu_custom_call.1} parent=15 // pred_check
          %p130 = pneg %p51
        $region18: #{tpu_custom_call.1} parent=15 // pred_check_branch
          %132 = sbr.rel (%p130) target = $region20
        $region19: #{tpu_custom_call.1} parent=15 // pred_region
          %s133 = sand.u32 %s41, 1
          %s134 = scalar_lea.sflag [#allocation4], %s133
          %s135 = sand.u32 %s41, 1
          %s136 = smul.addr %s135, 8
          %s137 = scalar_lea.vmem [#allocation3], %s136
          %139 = vsyncadd %s134, 0
          %s140 = sadd.s32 %s25, %s24
          %s141 = smul.addr %s140, 8
          %s142 = scalar_lea.hbm %s0, %s141
          %s144 = sshll.u32 %s142, 4
          %s145 = int_to_ptr.hbm [resolvable:$true] %s144
          %s146 = sshll.u32 %s137, 4
          %s147 = int_to_ptr.vmem [resolvable:$true] %s146
          %149 = dma.hbm_to_vmem [thread:$0]  %s145, 128, %s147, %s134
        $region20: #{tpu_custom_call.1} parent=15 // pred_fallthru
          _
        // Predicated region
        $region21: #{tpu_custom_call.1} parent=15 // pred_check
          %p150 = pneg %p79
        $region22: #{tpu_custom_call.1} parent=15 // pred_check_branch
          %152 = sbr.rel (%p150) target = $region24
        $region23: #{tpu_custom_call.1} parent=15 // pred_region
          %s153 = sand.u32 %s69, 1
          %s154 = scalar_lea.sflag [#allocation7], %s153
          %s155 = sand.u32 %s69, 1
          %s156 = smul.addr %s155, 8
          %s157 = scalar_lea.vmem [#allocation6], %s156
          %159 = vsyncadd %s154, 0
          %s160 = sadd.s32 %s25, %s24
          %s161 = smul.addr %s160, 8
          %s162 = scalar_lea.hbm %s1, %s161
          %s164 = sshll.u32 %s162, 4
          %s165 = int_to_ptr.hbm [resolvable:$true] %s164
          %s166 = sshll.u32 %s157, 4
          %s167 = int_to_ptr.vmem [resolvable:$true] %s166
          %169 = dma.hbm_to_vmem [thread:$0]  %s165, 128, %s167, %s154
        $region24: #{tpu_custom_call.1} parent=15 // pred_fallthru
          _
      $region16: #{tpu_custom_call.1} parent=5 // pred_fallthru
        _
      %p170 = scmp.le.s32.totalorder 1, %s17
      %p171 = scmp.lt.s32.totalorder %s17, 3
      %p172 = pnand %p170, %p171
      %p173 = pneg %p172
      // Predicated region
      $region25: #{tpu_custom_call.1} parent=5 // pred_check
        _
      $region26: #{tpu_custom_call.1} parent=5 // pred_check_branch
        %175 = sbr.rel (%p172) target = $region28
      $region27: #{tpu_custom_call.1} parent=5 // pred_region
        %s176 = ssub.s32 %s17, 1
        %s177 = sand.u32 %s44, 1
        %s178 = scalar_lea.sflag [#allocation4], %s177
        %s179 = sand.u32 %s44, 1
        %s180 = smul.addr %s179, 8
        %s181 = scalar_lea.vmem [#allocation3], %s180
        // Predicated region
        $region29: #{tpu_custom_call.1} parent=27 // pred_check
          %p182 = pneg %p57
        $region30: #{tpu_custom_call.1} parent=27 // pred_check_branch
          %184 = sbr.rel (%p182) target = $region32
        $region31: #{tpu_custom_call.1} parent=27 // pred_region
          %186 = dma.done %s178, 128
        $region32: #{tpu_custom_call.1} parent=27 // pred_fallthru
          _
        %s187 = sand.u32 %s72, 1
        %s188 = scalar_lea.sflag [#allocation7], %s187
        %s189 = sand.u32 %s72, 1
        %s190 = smul.addr %s189, 8
        %s191 = scalar_lea.vmem [#allocation6], %s190
        // Predicated region
        $region33: #{tpu_custom_call.1} parent=27 // pred_check
          %p192 = pneg %p85
        $region34: #{tpu_custom_call.1} parent=27 // pred_check_branch
          %194 = sbr.rel (%p192) target = $region36
        $region35: #{tpu_custom_call.1} parent=27 // pred_region
          %196 = dma.done %s188, 128
        $region36: #{tpu_custom_call.1} parent=27 // pred_fallthru
          _
        %s197 = sand.u32 %s44, 1
        %s198 = scalar_lea.sflag [#allocation4], %s197
        %s199 = sand.u32 %s44, 1
        %s200 = smul.addr %s199, 8
        %s201 = scalar_lea.vmem [#allocation3], %s200
        %p202 = pneg %p57
        %p203 = pneg %p54
        %s204 = sand.u32 %s72, 1
        %s205 = scalar_lea.sflag [#allocation7], %s204
        %s206 = sand.u32 %s72, 1
        %s207 = smul.addr %s206, 8
        %s208 = scalar_lea.vmem [#allocation6], %s207
        %p209 = pneg %p85
        %p210 = pneg %p82
        %p211 = pneg %p111
        %p212 = pneg %p108
        %s213 = sand.u32 %s98, 1
        %s214 = scalar_lea.sflag [#allocation5], %s213
        %s215 = sand.u32 %s98, 1
        %s216 = smul.addr %s215, 8
        %s217 = scalar_lea.vmem [#allocation8], %s216
        %p218 = scmp.eq.s32.totalorder %s27, 0
        // Predicated region
        $region37: #{tpu_custom_call.1} parent=27 // pred_check
          %p219 = pneg %p218
        $region38: #{tpu_custom_call.1} parent=27 // pred_check_branch
          %221 = sbr.rel (%p219) target = $region40
        $region39: #{tpu_custom_call.1} parent=27 // pred_region
          %vm222 = vcmask 130048
          %223 = vst.msk [vmem:[#allocation2] sm:$0xff] %vm222, 0.0
        $region40: #{tpu_custom_call.1} parent=27 // pred_fallthru
          _
        %v224 = vld [vmem:[%s181] sm:$0xff]
        %v225 = vld [vmem:[%s191] sm:$0xff]
        %v226 = vsub.f32 %v224, %v225
        %v227 = vmul.f32 %v226, %v226
        %v228 = vld [vmem:[#allocation2] sm:$0xff]
        %v229 = vadd.f32 %v228, %v227
        %vm230 = vcmask 130048
        %231 = vst.msk [vmem:[#allocation2] sm:$0xff] %vm230, %v229
        // Predicated region
        $region41: #{tpu_custom_call.1} parent=27 // pred_check
          %p232 = pneg %p218
        $region42: #{tpu_custom_call.1} parent=27 // pred_check_branch
          %234 = sbr.rel (%p232) target = $region44
        $region43: #{tpu_custom_call.1} parent=27 // pred_region
          %v235 = vld [vmem:[#allocation2] sm:$0xff]
          %236 = vst.msk [vmem:[%s217] sm:$0xff] %vm230, %v235
        $region44: #{tpu_custom_call.1} parent=27 // pred_fallthru
          _
        %s237 = sand.u32 %s98, 1
        %s238 = scalar_lea.sflag [#allocation5], %s237
        %s239 = sand.u32 %s98, 1
        %s240 = smul.addr %s239, 8
        %s241 = scalar_lea.vmem [#allocation8], %s240
        // Predicated region
        $region45: #{tpu_custom_call.1} parent=27 // pred_check
          %p242 = pneg %p108
        $region46: #{tpu_custom_call.1} parent=27 // pred_check_branch
          %244 = sbr.rel (%p242) target = $region48
        $region47: #{tpu_custom_call.1} parent=27 // pred_region
          %246 = vsyncadd %s238, 0
          %s247 = smul.addr %s26, 8
          %s248 = scalar_lea.hbm %s2, %s247
          %s250 = sshll.u32 %s241, 4
          %s251 = int_to_ptr.vmem [resolvable:$true] %s250
          %s252 = sshll.u32 %s248, 4
          %s253 = int_to_ptr.hbm [resolvable:$true] %s252
          %255 = dma.vmem_to_hbm [thread:$0]  %s251, 128, %s253, %s238
        $region48: #{tpu_custom_call.1} parent=27 // pred_fallthru
          _
      $region28: #{tpu_custom_call.1} parent=5 // pred_fallthru
        _
      %p256 = scmp.le.s32.totalorder 2, %s17
      // Predicated region
      $region49: #{tpu_custom_call.1} parent=5 // pred_check
        %p257 = pneg %p256
      $region50: #{tpu_custom_call.1} parent=5 // pred_check_branch
        %259 = sbr.rel (%p257) target = $region52
      $region51: #{tpu_custom_call.1} parent=5 // pred_region
        %s260 = ssub.s32 %s17, 2
        // Predicated region
        $region53: #{tpu_custom_call.1} parent=51 // pred_check
          %p261 = pneg %p114
        $region54: #{tpu_custom_call.1} parent=51 // pred_check_branch
          %263 = sbr.rel (%p261) target = $region56
        $region55: #{tpu_custom_call.1} parent=51 // pred_region
          %s264 = sand.u32 %s99, 1
          %s265 = scalar_lea.sflag [#allocation5], %s264
          %s266 = sand.u32 %s99, 1
          %s267 = smul.addr %s266, 8
          %s268 = scalar_lea.vmem [#allocation8], %s267
          %270 = dma.done %s265, 128
        $region56: #{tpu_custom_call.1} parent=51 // pred_fallthru
          _
      $region52: #{tpu_custom_call.1} parent=5 // pred_fallthru
        _
    $region6: #{tpu_custom_call.1} parent=1 // loop_footer
      %s21 = sadd.s32 1, %s17
    $region7: #{tpu_custom_call.1} parent=1 // loop_footer_branch
      %16 = sbr.rel target = $region3
    $region8: #{tpu_custom_call.1} parent=1 // loop_exit
      _
    %271 = vsyncpa [#allocation4], 1
    %s272 = scalar_lea.sflag [#allocation4], 1
    %273 = vsyncpa %s272, 1
    %274 = vsyncpa [#allocation7], 1
    %s275 = scalar_lea.sflag [#allocation7], 1
    %276 = vsyncpa %s275, 1
    %277 = vsyncpa [#allocation5], 1
    %s278 = scalar_lea.sflag [#allocation5], 1
    %279 = vsyncpa %s278, 1

</llo_original>
